<compile_context>
chip_gen: v5e
topology: v5e:2x2
jax: 0.10.0
libtpu: 0.0.40
codegen_flags: <defaults>
</compile_context>

<pallas_src>
import jax
import jax.numpy as jnp
import numpy as np
from jax.experimental import pallas as pl
from jax.experimental.pallas import tpu as pltpu


def _round_up(x, m):
    return ((x + m - 1) // m) * m


# ----------------------------------------------------------------------------
# Kernels
# ----------------------------------------------------------------------------
def _qkv_kernel_multi_k(x_ref, wt_ref, b_ref, o_ref, acc_ref):
    # x_ref  : [tm, tk]   token tile (compute dtype, e.g. bf16)
    # wt_ref : [tk, tn]   fused-weight tile (pre-transposed [E, out_dim])
    # b_ref  : [1,  tn]   fused-bias tile (f32)
    # o_ref  : [tm, tn]   output tile
    # acc_ref: [tm, tn]   f32 accumulator persisting across the K axis
    k = pl.program_id(2)

    @pl.when(k == 0)
    def _():
        acc_ref[...] = jnp.zeros_like(acc_ref)

    acc_ref[...] += jnp.dot(x_ref[...], wt_ref[...],
                            preferred_element_type=jnp.float32)

    @pl.when(k == pl.num_programs(2) - 1)
    def _():
        o_ref[...] = (acc_ref[...] + b_ref[...]).astype(o_ref.dtype)


def _qkv_kernel_single_k(x_ref, wt_ref, b_ref, o_ref):
    # Whole reduction fits one tile: no scratch, no init/finalize branches.
    o_ref[...] = (jnp.dot(x_ref[...], wt_ref[...],
                          preferred_element_type=jnp.float32)
                  + b_ref[...]).astype(o_ref.dtype)


# ----------------------------------------------------------------------------
# One-time (cacheable) weight layout preparation -- NOT per forward call.
# ----------------------------------------------------------------------------
def prepare_fused_qkv_params(w_fused, b_fused, *, tn=512, tk=512,
                             compute_dtype=jnp.bfloat16):
    """Transpose + cast + pad the fused weight/bias once.

    w_fused : [out_dim, emb_dim]   (torch nn.Linear layout)
    b_fused : [out_dim] or None
    Returns a dict consumed by fused_qkv_forward().
    """
    out_dim, emb_dim = w_fused.shape
    tn_eff = min(tn, _round_up(out_dim, 128))
    tk_eff = min(tk, _round_up(emb_dim, 128))
    n_pad = _round_up(out_dim, tn_eff)
    k_pad = _round_up(emb_dim, tk_eff)

    wt = w_fused.T                                   # [emb_dim, out_dim]
    if compute_dtype is not None:
        wt = wt.astype(compute_dtype)
    if (k_pad, n_pad) != (emb_dim, out_dim):
        wt = jnp.pad(wt, ((0, k_pad - emb_dim), (0, n_pad - out_dim)))

    if b_fused is None:
        b2d = jnp.zeros((1, n_pad), jnp.float32)
    else:
        b2d = b_fused.reshape(1, out_dim).astype(jnp.float32)
        if n_pad != out_dim:
            b2d = jnp.pad(b2d, ((0, 0), (0, n_pad - out_dim)))

    return dict(wt=wt, b=b2d, out_dim=out_dim, emb_dim=emb_dim,
                tn=tn_eff, tk=tk_eff, compute_dtype=compute_dtype)


# ----------------------------------------------------------------------------
# Forward
# ----------------------------------------------------------------------------
def fused_qkv_forward(x, params, splits, *, tm=512, out_dtype=None):
    """Fused QKV projection.

    x       : [B, S, E]
    params  : dict from prepare_fused_qkv_params (pre-transposed / cast / padded)
    splits  : (q_dim, k_dim, v_dim) with sum == out_dim
    """
    B, S, E = x.shape
    wt, b2d = params["wt"], params["b"]
    out_dim = params["out_dim"]
    tn, tk = params["tn"], params["tk"]
    compute_dtype = params["compute_dtype"]

    if E != params["emb_dim"]:
        raise ValueError(f"emb_dim mismatch: x has {E}, params expect "
                         f"{params['emb_dim']}")
    if sum(splits) != out_dim:
        raise ValueError(f"sum(splits)={sum(splits)} != out_dim={out_dim}")
    out_dtype = x.dtype if out_dtype is None else out_dtype

    tokens = B * S
    x2d = x.reshape(tokens, E)
    if compute_dtype is not None:
        x2d = x2d.astype(compute_dtype)

    # Round the token tile to the dtype's native sublane pack so vregs stay
    # dense (8 for f32, 16 for bf16, 32 for int8/fp8).
    pack = max(8, 32 // np.dtype(x2d.dtype).itemsize)
    tm_eff = min(tm, _round_up(tokens, pack))
    m_pad = _round_up(tokens, tm_eff)
    k_pad, n_pad = wt.shape

    # Megacore (v7x): with a single M block (decode), keep >= 2 N blocks so
    # both TensorCores get work.  tn stays a 128 multiple dividing n_pad.
    if (m_pad == tm_eff and n_pad // tn < 2 and tn >= 256
            and (tn // 2) % 128 == 0):
        tn = tn // 2

    if (m_pad, k_pad) != (tokens, E):
        x2d = jnp.pad(x2d, ((0, m_pad - tokens), (0, k_pad - E)))

    m_blocks = m_pad // tm_eff
    n_blocks = n_pad // tn
    k_blocks = k_pad // tk
    single_k = (k_blocks == 1)

    # VMEM footprint of the pipeline (double-buffered inputs/output + acc).
    # Only raise the scoped limit when needed; cap leaves headroom under
    # v7x's 64 MiB physical VMEM.
    in_b = np.dtype(x2d.dtype).itemsize
    w_b = np.dtype(wt.dtype).itemsize
    o_b = np.dtype(out_dtype).itemsize
    footprint = (2 * (tm_eff * tk * in_b + tk * tn * w_b
                      + tm_eff * tn * o_b + tn * 4)
                 + (0 if single_k else tm_eff * tn * 4))
    vmem_limit = None
    if footprint * 5 // 4 > 16 * 1024 * 1024:
        vmem_limit = min(footprint * 3 // 2, 56 * 1024 * 1024)

    cost = pl.CostEstimate(
        flops=2 * m_pad * n_pad * k_pad,
        transcendentals=0,
        bytes_accessed=(m_pad * k_pad * in_b + k_pad * n_pad * w_b
                        + m_pad * n_pad * o_b + n_pad * 4))

    if single_k:
        out2d = pl.pallas_call(
            _qkv_kernel_single_k,
            out_shape=jax.ShapeDtypeStruct((m_pad, n_pad), out_dtype),
            grid_spec=pltpu.PrefetchScalarGridSpec(
                num_scalar_prefetch=0,
                grid=(m_blocks, n_blocks),
                in_specs=[
                    pl.BlockSpec((tm_eff, tk), lambda i, j: (i, 0)),
                    pl.BlockSpec((tk, tn), lambda i, j: (0, j)),
                    pl.BlockSpec((1, tn), lambda i, j: (0, j)),
                ],
                out_specs=pl.BlockSpec((tm_eff, tn), lambda i, j: (i, j)),
            ),
            compiler_params=pltpu.CompilerParams(
                dimension_semantics=("parallel", "parallel"),
                vmem_limit_bytes=vmem_limit),
            cost_estimate=cost,
        )(x2d, wt, b2d)
    else:
        # TODO(synk): if decode on v7x is still DMA-latency exposed, add
        # pipeline_mode=pl.Buffered(3) on the weight BlockSpec.
        out2d = pl.pallas_call(
            _qkv_kernel_multi_k,
            out_shape=jax.ShapeDtypeStruct((m_pad, n_pad), out_dtype),
            grid_spec=pltpu.PrefetchScalarGridSpec(
                num_scalar_prefetch=0,
                grid=(m_blocks, n_blocks, k_blocks),
                in_specs=[
                    pl.BlockSpec((tm_eff, tk), lambda i, j, k: (i, k)),
                    pl.BlockSpec((tk, tn), lambda i, j, k: (k, j)),
                    pl.BlockSpec((1, tn), lambda i, j, k: (0, j)),
                ],
                out_specs=pl.BlockSpec((tm_eff, tn), lambda i, j, k: (i, j)),
                scratch_shapes=[pltpu.VMEM((tm_eff, tn), jnp.float32)],
            ),
            compiler_params=pltpu.CompilerParams(
                dimension_semantics=("parallel", "parallel", "arbitrary"),
                vmem_limit_bytes=vmem_limit),
            cost_estimate=cost,
        )(x2d, wt, b2d)

    out = out2d[:tokens, :out_dim].reshape(B, S, out_dim)
    # TODO(synk): when q/k/v split widths are each 128-aligned multiples of
    # tn, route j-blocks to three separate pallas outputs (or fold the split
    # into the consumer's reshape-to-heads) to avoid these slice copies.
    s0, s1, s2 = splits
    q = out[..., :s0]
    k = out[..., s0:s0 + s1]
    v = out[..., s0 + s1:s0 + s1 + s2]
    return q, k, v


if __name__ == "__main__":
    # FusedQKV hyper-parameters (small, consistent with the module)
    emb_dim = 32
    nheads = 4
    kvheads = 2
    emb_kq_per_head = 8
    emb_v_per_head = 8

    splits = [nheads * emb_kq_per_head,
              kvheads * emb_kq_per_head,
              kvheads * emb_v_per_head]          # [32, 16, 16]
    out_dim = sum(splits)                        # 64

    batch, seq = 2, 8

    key = jax.random.PRNGKey(0)
    kx, kw, kb = jax.random.split(key, 3)

    x = jax.random.normal(kx, (batch, seq, emb_dim), dtype=jnp.float32)
    w_fused = 0.02 * jax.random.truncated_normal(
        kw, -2.0, 2.0, (out_dim, emb_dim), dtype=jnp.float32)
    b_fused = 0.01 * jax.random.normal(kb, (out_dim,), dtype=jnp.float32)

    # One-time weight layout prep (cache next to the params in real use).
    params = prepare_fused_qkv_params(w_fused, b_fused,
                                      compute_dtype=jnp.bfloat16)

    q, k, v = fused_qkv_forward(x, params, splits)
    jax.block_until_ready((q, k, v))

    # Reference: fused linear then split.  The kernel feeds the MXU bf16 with
    # f32 accumulation, so compare tightly against a bf16-rounded-input f32
    # reference, and loosely against the pure-f32 reference.
    xb = x.astype(jnp.bfloat16).astype(jnp.float32)
    wb = w_fused.astype(jnp.bfloat16).astype(jnp.float32)
    ref = jnp.einsum("bse,oe->bso", xb, wb) + b_fused
    ref_f32 = jnp.einsum("bse,oe->bso", x, w_fused) + b_fused
    rq = ref[..., :splits[0]]
    rk = ref[..., splits[0]:splits[0] + splits[1]]
    rv = ref[..., splits[0] + splits[1]:]

    assert q.shape == (batch, seq, splits[0])
    assert k.shape == (batch, seq, splits[1])
    assert v.shape == (batch, seq, splits[2])
    assert jnp.allclose(q, rq, atol=1e-4, rtol=1e-3)
    assert jnp.allclose(k, rk, atol=1e-4, rtol=1e-3)
    assert jnp.allclose(v, rv, atol=1e-4, rtol=1e-3)
    assert jnp.allclose(jnp.concatenate([q, k, v], axis=-1), ref_f32,
                        atol=3e-2, rtol=3e-2)

    print("KERNEL_OK")
</pallas_src>

<mosaic_0001>
module attributes {stable_mosaic.version = 11 : i64} {
  func.func @_qkv_kernel_single_k(%arg0: i32, %arg1: i32, %arg2: memref<16x128xbf16, #tpu.memory_space<vmem>>, %arg3: memref<128x128xbf16, #tpu.memory_space<vmem>>, %arg4: memref<1x128xf32, #tpu.memory_space<vmem>>, %arg5: memref<16x128xf32, #tpu.memory_space<vmem>>) attributes {dimension_semantics = [#tpu.dimension_semantics<parallel>, #tpu.dimension_semantics<parallel>], iteration_bounds = array<i64: 1, 1>, scalar_prefetch = 0 : i64, scratch_operands = 0 : i64, tpu.core_type = #tpu.core_type<tc>, window_params = [{transform_indices = @transform_0, window_bounds = array<i64: 16, 128>}, {transform_indices = @transform_1, window_bounds = array<i64: 128, 128>}, {transform_indices = @transform_2, window_bounds = array<i64: 1, 128>}, {transform_indices = @transform_3, window_bounds = array<i64: 16, 128>}]} {
    %c0 = arith.constant 0 : index
    %c0_0 = arith.constant 0 : index
    %0 = vector.load %arg2[%c0, %c0_0] : memref<16x128xbf16, #tpu.memory_space<vmem>>, vector<16x128xbf16>
    %c0_1 = arith.constant 0 : index
    %c0_2 = arith.constant 0 : index
    %1 = vector.load %arg3[%c0_1, %c0_2] : memref<128x128xbf16, #tpu.memory_space<vmem>>, vector<128x128xbf16>
    %cst = arith.constant dense<0.000000e+00> : vector<16x128xf32>
    %2 = tpu.matmul %0, %1, %cst {dimension_numbers = #tpu.dot_dimension_numbers<[1], [0], [0], [1], [0, 0, 1, 1], [], []>} : vector<16x128xbf16>, vector<128x128xbf16>, vector<16x128xf32> -> vector<16x128xf32>
    %c0_3 = arith.constant 0 : index
    %c0_4 = arith.constant 0 : index
    %3 = vector.load %arg4[%c0_3, %c0_4] : memref<1x128xf32, #tpu.memory_space<vmem>>, vector<1x128xf32>
    %4 = vector.broadcast %3 : vector<1x128xf32> to vector<16x128xf32>
    %5 = arith.addf %2, %4 : vector<16x128xf32>
    %c0_5 = arith.constant 0 : index
    %c0_6 = arith.constant 0 : index
    %6 = vector.load %arg5[%c0_5, %c0_6] : memref<16x128xf32, #tpu.memory_space<vmem>>, vector<16x128xf32>
    tpu.vector_store %arg5[%c0_5, %c0_6], %5 {strides = array<i32>} : memref<16x128xf32, #tpu.memory_space<vmem>>, vector<16x128xf32>,
    return
  }
  func.func @transform_0(%arg0: i32, %arg1: i32) -> (i32, i32) {
    %c0_i32 = arith.constant 0 : i32
    %c0_i32_0 = arith.constant 0 : i32
    return %arg0, %c0_i32 : i32, i32
  }
  func.func @transform_1(%arg0: i32, %arg1: i32) -> (i32, i32) {
    %c0_i32 = arith.constant 0 : i32
    %c0_i32_0 = arith.constant 0 : i32
    return %c0_i32, %arg1 : i32, i32
  }
  func.func @transform_2(%arg0: i32, %arg1: i32) -> (i32, i32) {
    %c0_i32 = arith.constant 0 : i32
    %c0_i32_0 = arith.constant 0 : i32
    return %c0_i32, %arg1 : i32, i32
  }
  func.func @transform_3(%arg0: i32, %arg1: i32) -> (i32, i32) {
    %c0_i32 = arith.constant 0 : i32
    return %arg0, %arg1 : i32, i32
  }
}

</mosaic_0001>

<llo_original>
// kernel: tpu_custom_call.1
$region0: #{tpu_custom_call.1}
  #allocation0 [shape = 'u32[]', space=smem, size = 0x4, offset = 0x4, fixed_abs, tag = 'smem constant byte address 0x4 - core index']
  #allocation1 [shape = 'u32[72,128]{1,0:T(1,128)}', space=vmem, size = 0x9000, scoped, tag = 'internal scratch']
  %s0 = inlined_call_operand.hbm [shape: bf16[16,128], index: 0, kind: input, shape index: {}]
  %s1 = inlined_call_operand.hbm [shape: bf16[128,128], index: 1, kind: input, shape index: {}]
  %s2 = inlined_call_operand.vmem [shape: f32[1,128], index: 2, kind: input, shape index: {}]
  %s3 = inlined_call_operand.hbm [shape: f32[16,128], index: 3, kind: output, shape index: {}]
  %s4 = sld [smem:[#allocation0]]
  $region30: #{tpu_custom_call.1} parent=0
    _
  %s6 = ssub.s32 1, %s4
  %s7 = scalar_select 0, %s6, %s4
  $region1: #{tpu_custom_call.1} parent=0
    #allocation2 [shape = 'u8[4096]{0}', space=vmem, size = 0x1000, scoped, tag = 'input window, operand 0, single buffered']
    #allocation3 [shape = 's32[1]{0}', space=sflag, size = 0x4, scoped, tag = 'scoped memory for tpu_custom_call.1']
    #allocation4 [shape = 's32[1]{0}', space=sflag, size = 0x4, scoped, tag = 'scoped memory for tpu_custom_call.1']
    #allocation5 [shape = 'u8[32768]{0}', space=vmem, size = 0x8000, scoped, tag = 'input window, operand 1, single buffered']
    #allocation6 [shape = 's32[1]{0}', space=sflag, size = 0x4, scoped, tag = 'scoped memory for tpu_custom_call.1']
    #allocation7 [shape = 'u8[8192]{0}', space=vmem, size = 0x2000, scoped, tag = 'output window, operand 0, single buffered']
    %8 = vsyncpa [#allocation3], 0
    %9 = vsyncpa [#allocation6], 0
    %10 = vsyncpa [#allocation4], 0
    // Predicated region
    $region2: #{tpu_custom_call.1} parent=1 // pred_check
      _
    $region3: #{tpu_custom_call.1} parent=1 // pred_check_branch
      %12 = sbr.rel (0) target = $region5
    $region4: #{tpu_custom_call.1} parent=1 // pred_region
      %14 = vsyncadd [#allocation3], 0
      %s15 = sshll.u32 %s0, 4
      %s16 = int_to_ptr.hbm [resolvable:$true] %s15
      %s17 = sshll.u32 [#allocation2], 4
      %s18 = int_to_ptr.vmem [resolvable:$true] %s17
      %23 = dma.hbm_to_vmem [thread:$0]  %s16, 128, %s18, [#allocation3], 64, 64, 4
    $region5: #{tpu_custom_call.1} parent=1 // pred_fallthru
      _
    // Predicated region
    $region6: #{tpu_custom_call.1} parent=1 // pred_check
      _
    $region7: #{tpu_custom_call.1} parent=1 // pred_check_branch
      %25 = sbr.rel (0) target = $region9
    $region8: #{tpu_custom_call.1} parent=1 // pred_region
      %27 = vsyncadd [#allocation6], 0
      %s28 = sshll.u32 %s1, 4
      %s29 = int_to_ptr.hbm [resolvable:$true] %s28
      %s30 = sshll.u32 [#allocation5], 4
      %s31 = int_to_ptr.vmem [resolvable:$true] %s30
      %36 = dma.hbm_to_vmem [thread:$0]  %s29, 1024, %s31, [#allocation6], 64, 64, 4
    $region9: #{tpu_custom_call.1} parent=1 // pred_fallthru
      _
    // Predicated region
    $region10: #{tpu_custom_call.1} parent=1 // pred_check
      _
    $region11: #{tpu_custom_call.1} parent=1 // pred_check_branch
      %38 = sbr.rel (0) target = $region13
    $region12: #{tpu_custom_call.1} parent=1 // pred_region
      _
    $region13: #{tpu_custom_call.1} parent=1 // pred_fallthru
      _
    // Predicated region
    $region14: #{tpu_custom_call.1} parent=1 // pred_check
      _
    $region15: #{tpu_custom_call.1} parent=1 // pred_check_branch
      %40 = sbr.rel (0) target = $region17
    $region16: #{tpu_custom_call.1} parent=1 // pred_region
      %42 = dma.done [#allocation3], 128
    $region17: #{tpu_custom_call.1} parent=1 // pred_fallthru
      _
    // Predicated region
    $region18: #{tpu_custom_call.1} parent=1 // pred_check
      _
    $region19: #{tpu_custom_call.1} parent=1 // pred_check_branch
      %44 = sbr.rel (0) target = $region21
    $region20: #{tpu_custom_call.1} parent=1 // pred_region
      %46 = dma.done [#allocation6], 1024
    $region21: #{tpu_custom_call.1} parent=1 // pred_fallthru
      _
    %v47 = vld [vmem:[#allocation2] sm:$0xf]
    %v48 = vld [vmem:[#allocation2 + $0x4] sm:$0xf]
    %v49 = vld [vmem:[#allocation5] sm:$0xf]
    %v50 = vld [vmem:[#allocation5 + $0x4] sm:$0xf]
    %v51 = vld [vmem:[#allocation5 + $0x8] sm:$0xf]
    %v52 = vld [vmem:[#allocation5 + $0xc] sm:$0xf]
    %v53 = vld [vmem:[#allocation5 + $0x10] sm:$0xf]
    %v54 = vld [vmem:[#allocation5 + $0x14] sm:$0xf]
    %v55 = vld [vmem:[#allocation5 + $0x18] sm:$0xf]
    %v56 = vld [vmem:[#allocation5 + $0x1c] sm:$0xf]
    %v57 = vld [vmem:[#allocation5 + $0x20] sm:$0xf]
    %v58 = vld [vmem:[#allocation5 + $0x24] sm:$0xf]
    %v59 = vld [vmem:[#allocation5 + $0x28] sm:$0xf]
    %v60 = vld [vmem:[#allocation5 + $0x2c] sm:$0xf]
    %v61 = vld [vmem:[#allocation5 + $0x30] sm:$0xf]
    %v62 = vld [vmem:[#allocation5 + $0x34] sm:$0xf]
    %v63 = vld [vmem:[#allocation5 + $0x38] sm:$0xf]
    %v64 = vld [vmem:[#allocation5 + $0x3c] sm:$0xf]
    %v65 = vld [vmem:[%s2] sm:$0x1]
    %v67 = vperm.slane %v65, 0
    %v71 = vunpack.c.l.b16 %v47
    %v72 = vunpack.c.l.b16 %v48
    %v73 = vpack.c.b16 %v72, %v71
    %v91 = vunpack.c.l.b16 %v49
    %v92 = vunpack.c.l.b16 %v50
    %v93 = vunpack.c.l.b16 %v51
    %v94 = vunpack.c.l.b16 %v52
    %v95 = vunpack.c.l.b16 %v53
    %v96 = vunpack.c.l.b16 %v54
    %v97 = vunpack.c.l.b16 %v55
    %v98 = vunpack.c.l.b16 %v56
    %v99 = vunpack.c.l.b16 %v57
    %v100 = vunpack.c.l.b16 %v58
    %v101 = vunpack.c.l.b16 %v59
    %v102 = vunpack.c.l.b16 %v60
    %v103 = vunpack.c.l.b16 %v61
    %v104 = vunpack.c.l.b16 %v62
    %v105 = vunpack.c.l.b16 %v63
    %v106 = vunpack.c.l.b16 %v64
    %v107 = vpack.c.b16 %v92, %v91
    %v108 = vpack.c.b16 %v94, %v93
    %v109 = vpack.c.b16 %v96, %v95
    %v110 = vpack.c.b16 %v98, %v97
    %v111 = vpack.c.b16 %v100, %v99
    %v112 = vpack.c.b16 %v102, %v101
    %v113 = vpack.c.b16 %v104, %v103
    %v114 = vpack.c.b16 %v106, %v105
    %123 = vmatpush.bf16.msra.mxu0 %v114
    %124 = vmatpush.bf16.msra.mxu0 %v113
    %125 = vmatpush.bf16.msra.mxu0 %v112
    %126 = vmatpush.bf16.msra.mxu0 %v111
    %127 = vmatpush.bf16.msra.mxu0 %v110
    %128 = vmatpush.bf16.msra.mxu0 %v109
    %129 = vmatpush.bf16.msra.mxu0 %v108
    %130 = vmatpush.bf16.msra.mxu0 %v107
    %131 = vmatmul.bf16.gmra.mxu0 %v73
    %v132 = vpop.f32.mrf.mxu0
    %v133 = vadd.f32 %v67, %v132
    %v134 = vpop.f32.mrf.mxu0
    %v135 = vadd.f32 %v67, %v134
    %136 = vdwg.mxu0
    %137 = vst [vmem:[#allocation7] sm:$0xff] %v133
    %138 = vst [vmem:[#allocation7 + $0x8] sm:$0xff] %v135
    // Predicated region
    $region22: #{tpu_custom_call.1} parent=1 // pred_check
      _
    $region23: #{tpu_custom_call.1} parent=1 // pred_check_branch
      %140 = sbr.rel (0) target = $region25
    $region24: #{tpu_custom_call.1} parent=1 // pred_region
      %142 = vsyncadd [#allocation4], 0
      %s143 = sshll.u32 [#allocation7], 4
      %s144 = int_to_ptr.vmem [resolvable:$true] %s143
      %s145 = sshll.u32 %s3, 4
      %s146 = int_to_ptr.hbm [resolvable:$true] %s145
      %151 = dma.vmem_to_hbm [thread:$0]  %s144, 256, %s146, [#allocation4], 128, 128, 8
    $region25: #{tpu_custom_call.1} parent=1 // pred_fallthru
      _
    // Predicated region
    $region26: #{tpu_custom_call.1} parent=1 // pred_check
      _
    $region27: #{tpu_custom_call.1} parent=1 // pred_check_branch
      %153 = sbr.rel (0) target = $region29
    $region28: #{tpu_custom_call.1} parent=1 // pred_region
      %155 = dma.done [#allocation4], 256
    $region29: #{tpu_custom_call.1} parent=1 // pred_fallthru
      _
    %156 = vsyncpa [#allocation3], 1
    %157 = vsyncpa [#allocation6], 1
    %158 = vsyncpa [#allocation4], 1

</llo_original>
